<compile_context>
chip_gen: v5e
topology: v5e:2x2
jax: 0.10.0
libtpu: 0.0.40
codegen_flags: <defaults>
</compile_context>

<pallas_src>
import time

import numpy as np

import jax
import jax.numpy as jnp
from jax.experimental import pallas as pl
from jax.experimental.pallas import tpu as pltpu


# MXU operand dtype (bf16 native on v5e / v6e / v7x); accumulation and all
# elementwise epilogue math stay in f32.
_COMPUTE_DTYPE = jnp.bfloat16


# ----------------------------------------------------------------------------
# Layer descriptors (mirror the PyTorch layer_list entries; parameters only)
# ----------------------------------------------------------------------------
class Conv2d:
    """nn.Conv2d(3x3, padding=1). Weight layout OIHW (PyTorch)."""
    is_conv = True

    def __init__(self, weight_oihw, bias):
        self.weight = weight_oihw
        self.bias = bias


class ReLU:
    is_conv = False


class MaxPool2d:
    """nn.MaxPool2d(kernel_size=2, stride=2)."""
    is_conv = False


class Flatten:
    is_conv = False


class Linear:
    """nn.Linear. Weight layout (out_features, in_features) (PyTorch)."""
    is_conv = False

    def __init__(self, weight_oi, bias):
        self.weight = weight_oi
        self.bias = bias


# ----------------------------------------------------------------------------
# Build-time weight preparation (hoisted out of the hot path)
# ----------------------------------------------------------------------------
def _build_stage_weights(w_oihw, bias, w_log, group_in, compute_dtype):
    """3x3 SAME conv as one kh-folded row GEMM.

    Input row layout: lane = wi*group_in + ci  (ci < cin); physical row width
    P_in = w_log * group_in.  Lanes with ci >= cin hold pool garbage and get
    zero weight rows (this is how the deferred width-pool compaction is
    folded into the weights).  Output rows are compact: lane = wo*cout + co.

    Returns:
      Bcat (3*P_in, w_log*cout)  in `compute_dtype`
      bt   (1, w_log*cout)       bias tiled over width, f32
    """
    w = np.asarray(jax.device_get(w_oihw), np.float32)
    b = np.asarray(jax.device_get(bias), np.float32)
    cout, cin, kh_n, kw_n = w.shape
    assert kh_n == 3 and kw_n == 3, "only 3x3 convs supported"
    assert cin <= group_in
    p_in = w_log * group_in
    B = np.zeros((3 * p_in, w_log * cout), np.float32)
    for kh in range(3):
        for kw in range(3):
            tap = w[:, :, kh, kw].T                    # (cin, cout)
            for wo in range(w_log):
                wi = wo + kw - 1
                if 0 <= wi < w_log:                    # out-of-range == zero pad
                    r0 = kh * p_in + wi * group_in
                    B[r0:r0 + cin, wo * cout:(wo + 1) * cout] = tap
    bt = np.tile(b, w_log)[None, :]                    # (1, w_log*cout)
    return jnp.asarray(B, compute_dtype), jnp.asarray(bt, jnp.float32)


def _build_linear(w_oi, bias, h_f, w_f, c_f, group_f, hidden_pad, compute_dtype):
    """Reorder the Linear weight from PyTorch NCHW-flatten order to the
    kernel's (h, physical-lane) layout, zero rows at pool-garbage lanes, and
    zero-pad the output columns to `hidden_pad` (lane-dense stores)."""
    w = np.asarray(jax.device_get(w_oi), np.float32)
    b = np.asarray(jax.device_get(bias), np.float32)
    out_f = w.shape[0]
    assert w.shape[1] == c_f * h_f * w_f
    p_f = w_f * group_f
    wt = w.reshape(out_f, c_f, h_f, w_f)               # PyTorch NCHW flatten
    wr = np.zeros((h_f * p_f, hidden_pad), np.float32)
    for h in range(h_f):
        for wi in range(w_f):
            for c in range(c_f):
                wr[h * p_f + wi * group_f + c, :out_f] = wt[:, c, h, wi]
    br = np.zeros((1, hidden_pad), np.float32)
    br[0, :out_f] = b
    return jnp.asarray(wr, compute_dtype), jnp.asarray(br, jnp.float32)


def _pick_batch_tile(n):
    """Batch-tile policy: maximize M while keeping >=2 grid steps when the
    batch is large enough (dual-TC on v7x) and keeping block shapes legal."""
    if n <= 8:
        return n            # single grid step, block == full batch
    if n <= 64:
        return 8
    return 32


# ----------------------------------------------------------------------------
# Fused whole-network kernel (one grid step = one batch tile of images)
# ----------------------------------------------------------------------------
def _make_fused_kernel(stage_dims, compute_dtype):
    """stage_dims: tuple of (H, W, cin, cout, p_in) per conv(+relu)+pool stage."""
    n_stages = len(stage_dims)

    def kernel(*refs):
        x_ref = refs[0]
        w_refs = refs[1:1 + 2 * n_stages]
        wlin_ref = refs[1 + 2 * n_stages]
        blin_ref = refs[2 + 2 * n_stages]
        out_ref = refs[3 + 2 * n_stages]

        a = x_ref[...]                                   # (B, H, P_in) f32
        B = a.shape[0]

        for s, (H, W, cin, cout, p_in) in enumerate(stage_dims):
            bcat = w_refs[2 * s][...]                    # (3*p_in, W*cout) bf16
            bt = w_refs[2 * s + 1][...]                  # (1, W*cout)     f32
            NL = W * cout

            # kh-fold: one GEMM covers all 9 taps.  Build (B*H, 3*p_in) from
            # three height-shifted views (zero rows at the image borders);
            # the batch axis stays explicit so shifts never cross images.
            ac = a.astype(compute_dtype)
            zrow = jnp.zeros((B, 1, p_in), compute_dtype)
            ap = jnp.concatenate([zrow, ac, zrow], axis=1)          # (B, H+2, p_in)
            a3 = jnp.concatenate(
                [ap[:, 0:H, :], ap[:, 1:H + 1, :], ap[:, 2:H + 2, :]],
                axis=-1)                                            # (B, H, 3*p_in)
            a3 = a3.reshape(B * H, 3 * p_in)                        # M = B*H rows

            # Single MXU GEMM: M=B*H, K=3*p_in, N=W*cout (f32 accumulate).
            z = jax.lax.dot_general(
                a3, bcat, (((1,), (0,)), ((), ())),
                preferred_element_type=jnp.float32)                 # (B*H, NL)

            # Fused bias + ReLU epilogue (f32).
            y = jnp.maximum(z + bt, 0.0)

            # 2x2 stride-2 max pool.
            #   Height: compacts rows (H even => pairs never cross images).
            yr = y.reshape((B * H) // 2, 2, NL)
            yh = jnp.maximum(yr[:, 0, :], yr[:, 1, :])              # (B*H/2, NL)
            #   Width: lane-dense shifted-neighbour max; the "keep every
            #   other cout group" compaction is folded into the next stage's
            #   (or the Linear's) weights as zero K-rows, so vregs stay on
            #   full-width lane tiles.
            rows = (B * H) // 2
            shifted = jnp.concatenate(
                [yh[:, cout:], jnp.zeros((rows, cout), jnp.float32)], axis=-1)
            yw = jnp.maximum(yh, shifted)                           # (B*H/2, NL)

            a = yw.reshape(B, H // 2, NL)        # next stage: p_in == NL

        # Flatten + Linear, decomposed over the (small) height axis so no
        # sublane->lane merge reshape is needed.  Output columns are padded
        # to a multiple of 128 => lane-dense stores (sliced in the wrapper).
        Bsz, Hf, Pf = a.shape
        wl = wlin_ref[...]                                          # (Hf*Pf, hidden_pad)
        acc = None
        for hh in range(Hf):
            part = jax.lax.dot_general(
                a[:, hh, :].astype(compute_dtype),
                wl[hh * Pf:(hh + 1) * Pf, :],
                (((1,), (0,)), ((), ())),
                preferred_element_type=jnp.float32)                 # (B, hidden_pad)
            acc = part if acc is None else acc + part
        out = acc + blin_ref[...]
        out_ref[...] = out.astype(out_ref.dtype)

    return kernel


# ----------------------------------------------------------------------------
# DNN container mirroring the PyTorch module's forward semantics
# ----------------------------------------------------------------------------
class DNN:
    def __init__(self, layer_list, partitioning_layer):
        self.layer_list = list(layer_list)
        self.partitioning_layer = partitioning_layer
        self._compiled = {}     # keyed by input shape

    # -- pattern-match the layer list into conv stages + final linear --------
    def _parse(self):
        stages, i, n = [], 0, len(self.layer_list)
        while i < n and isinstance(self.layer_list[i], Conv2d):
            conv = self.layer_list[i]
            i += 1
            assert i < n and isinstance(self.layer_list[i], ReLU), \
                "fused DNN expects Conv2d -> ReLU"
            i += 1
            assert i < n and isinstance(self.layer_list[i], MaxPool2d), \
                "fused DNN expects Conv2d -> ReLU -> MaxPool2d"
            i += 1
            stages.append((conv.weight, conv.bias))
        assert i < n and isinstance(self.layer_list[i], Flatten)
        i += 1
        assert i < n and isinstance(self.layer_list[i], Linear)
        lin = self.layer_list[i]
        i += 1
        assert i == n, "unsupported trailing layers"
        return stages, (lin.weight, lin.bias)

    # -- build the fused, jitted forward for a given input shape -------------
    def _get_compiled(self, x_shape):
        key = tuple(int(d) for d in x_shape)
        if key in self._compiled:
            return self._compiled[key]

        N, Cin, H, W = key
        stages, (w3, b3) = self._parse()

        b_tile = _pick_batch_tile(N)
        n_pad = ((N + b_tile - 1) // b_tile) * b_tile
        grid = (n_pad // b_tile,)

        # Per-stage geometry.  `group` is the lane stride between logical
        # width positions of the stage input (doubles after each pool because
        # the width compaction is deferred into the weights).
        stage_dims, stage_consts = [], []
        h, w, cin, group = H, W, Cin, Cin
        for (cw, cb) in stages:
            assert h % 2 == 0 and w % 2 == 0
            cout = int(cw.shape[0])
            assert int(cw.shape[1]) == cin
            p_in = w * group
            bcat, bt = _build_stage_weights(cw, cb, w, group, _COMPUTE_DTYPE)
            stage_dims.append((h, w, cin, cout, p_in))
            stage_consts += [bcat, bt]
            h, w, cin, group = h // 2, w // 2, cout, 2 * cout

        out_features = int(w3.shape[0])
        hidden_pad = ((out_features + 127) // 128) * 128
        w3r, b3r = _build_linear(w3, b3, h, w, cin, group, hidden_pad,
                                 _COMPUTE_DTYPE)

        kernel = _make_fused_kernel(tuple(stage_dims), _COMPUTE_DTYPE)

        p1 = W * Cin
        in_specs = [pl.BlockSpec((b_tile, H, p1), lambda n: (n, 0, 0))]
        # Grid-invariant weight operands (constant index_map; Pallas will not
        # re-fetch them across steps).
        for arr in stage_consts + [w3r, b3r]:
            in_specs.append(pl.BlockSpec(arr.shape, lambda n: (0, 0)))
        out_spec = pl.BlockSpec((b_tile, hidden_pad), lambda n: (n, 0))

        fused_call = pl.pallas_call(
            kernel,
            out_shape=jax.ShapeDtypeStruct((n_pad, hidden_pad), jnp.float32),
            grid=grid,
            in_specs=in_specs,
            out_specs=out_spec,
            compiler_params=pltpu.CompilerParams(
                dimension_semantics=("parallel",)),   # dual-TC on v7x
        )
        consts = tuple(stage_consts) + (w3r, b3r)

        @jax.jit
        def fwd(x_nchw):
            # Layout plumbing only: NCHW -> per-row (w-major, c-minor) rows.
            # Height padding is handled inside the kernel (no jnp.pad here).
            xr = jnp.transpose(x_nchw, (0, 2, 3, 1)).reshape(N, H, p1)
            xr = xr.astype(jnp.float32)
            if n_pad != N:
                xr = jnp.concatenate(
                    [xr, jnp.zeros((n_pad - N, H, p1), jnp.float32)], axis=0)
            y = fused_call(xr, *consts)               # (n_pad, hidden_pad)
            return y[:N, :out_features]

        self._compiled[key] = fwd
        return fwd

    # -- forward mirroring the reference module -----------------------------
    def forward(self, inputs, n_model):
        dict_runtime = {}
        if self.partitioning_layer == 'input':
            return (inputs, None)
        fwd = self._get_compiled(inputs.shape)
        # Single host sync around the one fused kernel (no per-layer syncs).
        start_time = time.time()
        out = fwd(inputs)
        jax.block_until_ready(out)
        totaltime = time.time() - start_time
        # TODO(synk): with the whole network fused into one TPU kernel,
        # per-conv-layer wall-clock attribution is not separable; each 'l<j>'
        # key gets the cumulative fused-call time (matching the reference
        # code's no-reset `totatime` behaviour). The reference's early-break
        # at the partitioning conv uses an uninitialized `cont_vertex` and an
        # undefined `Branch` class, so that path is not reproducible here.
        j = 0
        for layer in self.layer_list:
            if isinstance(layer, Conv2d):
                j += 1
                dict_runtime['l%s' % j] = totaltime
        return (out, dict_runtime)


# ----------------------------------------------------------------------------
# Pure-JAX reference for correctness checking
# ----------------------------------------------------------------------------
def _ref_forward(x, p):
    def conv(x, w, b):
        y = jax.lax.conv_general_dilated(
            x, w, window_strides=(1, 1), padding='SAME',
            dimension_numbers=('NCHW', 'OIHW', 'NCHW'))
        return jnp.maximum(y + b[None, :, None, None], 0.0)

    def pool(x):
        return jax.lax.reduce_window(
            x, -jnp.inf, jax.lax.max, (1, 1, 2, 2), (1, 1, 2, 2), 'VALID')

    y = pool(conv(x, p['w1'], p['b1']))
    y = pool(conv(y, p['w2'], p['b2']))
    y = y.reshape(y.shape[0], -1)                 # NCHW flatten (PyTorch order)
    return y @ p['w3'].T + p['b3']


# ----------------------------------------------------------------------------
if __name__ == "__main__":
    key = jax.random.PRNGKey(0)
    k = jax.random.split(key, 8)

    N, Cin, H, W = 2, 4, 16, 16
    C1, C2, HIDDEN = 8, 16, 32

    params = {
        'w1': 0.1 * jax.random.normal(k[0], (C1, Cin, 3, 3), jnp.float32),
        'b1': 0.1 * jax.random.normal(k[1], (C1,), jnp.float32),
        'w2': 0.1 * jax.random.normal(k[2], (C2, C1, 3, 3), jnp.float32),
        'b2': 0.1 * jax.random.normal(k[3], (C2,), jnp.float32),
        'w3': 0.1 * jax.random.normal(k[4], (HIDDEN, C2 * (H // 4) * (W // 4)),
                                      jnp.float32),
        'b3': 0.1 * jax.random.normal(k[5], (HIDDEN,), jnp.float32),
    }
    x = jax.random.normal(k[6], (N, Cin, H, W), jnp.float32)

    layer_list = [
        Conv2d(params['w1'], params['b1']),
        ReLU(),
        MaxPool2d(),
        Conv2d(params['w2'], params['b2']),
        ReLU(),
        MaxPool2d(),
        Flatten(),
        Linear(params['w3'], params['b3']),
    ]

    model = DNN(layer_list, partitioning_layer='output')
    out, dict_runtime = model.forward(x, n_model=1)
    out = jax.block_until_ready(out)

    ref = _ref_forward(x, params)
    assert out.shape == (N, HIDDEN), out.shape
    # Tolerance loosened vs the pure-f32 version because the MXU operands
    # (weights + activations) are bf16; accumulation and epilogue are f32.
    assert jnp.allclose(out, ref, atol=5e-2, rtol=5e-2), \
        float(jnp.max(jnp.abs(out - ref)))
    assert set(dict_runtime.keys()) == {'l1', 'l2'}, dict_runtime

    # also exercise the 'input' partitioning path
    passthrough, none_dict = DNN(layer_list, 'input').forward(x, n_model=1)
    assert none_dict is None and passthrough is x

    print("KERNEL_OK")
</pallas_src>

<mosaic_0001>
module attributes {stable_mosaic.version = 11 : i64} {
  func.func @kernel(%arg0: i32, %arg1: memref<2x16x64xf32, #tpu.memory_space<vmem>>, %arg2: memref<192x128xbf16, #tpu.memory_space<vmem>>, %arg3: memref<1x128xf32, #tpu.memory_space<vmem>>, %arg4: memref<384x128xbf16, #tpu.memory_space<vmem>>, %arg5: memref<1x128xf32, #tpu.memory_space<vmem>>, %arg6: memref<512x128xbf16, #tpu.memory_space<vmem>>, %arg7: memref<1x128xf32, #tpu.memory_space<vmem>>, %arg8: memref<2x128xf32, #tpu.memory_space<vmem>>) attributes {dimension_semantics = [#tpu.dimension_semantics<parallel>], iteration_bounds = array<i64: 1>, scalar_prefetch = 0 : i64, scratch_operands = 0 : i64, tpu.core_type = #tpu.core_type<tc>, window_params = [{transform_indices = @transform_0, window_bounds = array<i64: 2, 16, 64>}, {pipeline_mode = #tpu.pipeline_mode<synchronous>, transform_indices = @transform_1, window_bounds = array<i64: 192, 128>}, {pipeline_mode = #tpu.pipeline_mode<synchronous>, transform_indices = @transform_2, window_bounds = array<i64: 1, 128>}, {pipeline_mode = #tpu.pipeline_mode<synchronous>, transform_indices = @transform_3, window_bounds = array<i64: 384, 128>}, {pipeline_mode = #tpu.pipeline_mode<synchronous>, transform_indices = @transform_4, window_bounds = array<i64: 1, 128>}, {pipeline_mode = #tpu.pipeline_mode<synchronous>, transform_indices = @transform_5, window_bounds = array<i64: 512, 128>}, {pipeline_mode = #tpu.pipeline_mode<synchronous>, transform_indices = @transform_6, window_bounds = array<i64: 1, 128>}, {transform_indices = @transform_7, window_bounds = array<i64: 2, 128>}]} {
    %c0 = arith.constant 0 : index
    %c0_0 = arith.constant 0 : index
    %c0_1 = arith.constant 0 : index
    %0 = vector.load %arg1[%c0, %c0_0, %c0_1] : memref<2x16x64xf32, #tpu.memory_space<vmem>>, vector<2x16x64xf32>
    %c0_2 = arith.constant 0 : index
    %c0_3 = arith.constant 0 : index
    %1 = vector.load %arg2[%c0_2, %c0_3] : memref<192x128xbf16, #tpu.memory_space<vmem>>, vector<192x128xbf16>
    %c0_4 = arith.constant 0 : index
    %c0_5 = arith.constant 0 : index
    %2 = vector.load %arg3[%c0_4, %c0_5] : memref<1x128xf32, #tpu.memory_space<vmem>>, vector<1x128xf32>
    %3 = arith.truncf %0 : vector<2x16x64xf32> to vector<2x16x64xbf16>
    %cst = arith.constant 0.000000e+00 : bf16
    %4 = vector.broadcast %cst : bf16 to vector<2x1x64xbf16>
    %5 = tpu.concatenate %4, %3, %4 in 1 : vector<2x1x64xbf16>, vector<2x16x64xbf16>, vector<2x1x64xbf16> -> vector<2x18x64xbf16>
    %6 = vector.extract_strided_slice %5 {offsets = [0, 0, 0], sizes = [2, 16, 64], strides = [1, 1, 1]} : vector<2x18x64xbf16> to vector<2x16x64xbf16>
    %7 = vector.extract_strided_slice %5 {offsets = [0, 1, 0], sizes = [2, 16, 64], strides = [1, 1, 1]} : vector<2x18x64xbf16> to vector<2x16x64xbf16>
    %8 = vector.extract_strided_slice %5 {offsets = [0, 2, 0], sizes = [2, 16, 64], strides = [1, 1, 1]} : vector<2x18x64xbf16> to vector<2x16x64xbf16>
    %9 = tpu.concatenate %6, %7, %8 in 2 : vector<2x16x64xbf16>, vector<2x16x64xbf16>, vector<2x16x64xbf16> -> vector<2x16x192xbf16>
    %10 = vector.shape_cast %9 : vector<2x16x192xbf16> to vector<32x192xbf16>
    %cst_6 = arith.constant dense<0.000000e+00> : vector<32x128xf32>
    %11 = tpu.matmul %10, %1, %cst_6 {dimension_numbers = #tpu.dot_dimension_numbers<[1], [0], [0], [1], [0, 0, 1, 1], [], []>} : vector<32x192xbf16>, vector<192x128xbf16>, vector<32x128xf32> -> vector<32x128xf32>
    %12 = vector.broadcast %2 : vector<1x128xf32> to vector<32x128xf32>
    %13 = arith.addf %11, %12 : vector<32x128xf32>
    %cst_7 = arith.constant 0.000000e+00 : f32
    %14 = vector.broadcast %cst_7 : f32 to vector<32x128xf32>
    %15 = arith.maximumf %13, %14 : vector<32x128xf32>
    %16 = vector.shape_cast %15 : vector<32x128xf32> to vector<16x2x128xf32>
    %17 = vector.extract_strided_slice %16 {offsets = [0, 0, 0], sizes = [16, 1, 128], strides = [1, 1, 1]} : vector<16x2x128xf32> to vector<16x1x128xf32>
    %18 = vector.shape_cast %17 : vector<16x1x128xf32> to vector<16x128xf32>
    %19 = vector.extract_strided_slice %16 {offsets = [0, 1, 0], sizes = [16, 1, 128], strides = [1, 1, 1]} : vector<16x2x128xf32> to vector<16x1x128xf32>
    %20 = vector.shape_cast %19 : vector<16x1x128xf32> to vector<16x128xf32>
    %21 = arith.maximumf %18, %20 : vector<16x128xf32>
    %22 = vector.extract_strided_slice %21 {offsets = [0, 8], sizes = [16, 120], strides = [1, 1]} : vector<16x128xf32> to vector<16x120xf32>
    %cst_8 = arith.constant 0.000000e+00 : f32
    %23 = vector.broadcast %cst_8 : f32 to vector<16x8xf32>
    %24 = tpu.concatenate %22, %23 in 1 : vector<16x120xf32>, vector<16x8xf32> -> vector<16x128xf32>
    %25 = arith.maximumf %21, %24 : vector<16x128xf32>
    %26 = vector.shape_cast %25 : vector<16x128xf32> to vector<2x8x128xf32>
    %c0_9 = arith.constant 0 : index
    %c0_10 = arith.constant 0 : index
    %27 = vector.load %arg4[%c0_9, %c0_10] : memref<384x128xbf16, #tpu.memory_space<vmem>>, vector<384x128xbf16>
    %c0_11 = arith.constant 0 : index
    %c0_12 = arith.constant 0 : index
    %28 = vector.load %arg5[%c0_11, %c0_12] : memref<1x128xf32, #tpu.memory_space<vmem>>, vector<1x128xf32>
    %29 = arith.truncf %26 : vector<2x8x128xf32> to vector<2x8x128xbf16>
    %cst_13 = arith.constant 0.000000e+00 : bf16
    %30 = vector.broadcast %cst_13 : bf16 to vector<2x1x128xbf16>
    %31 = tpu.concatenate %30, %29, %30 in 1 : vector<2x1x128xbf16>, vector<2x8x128xbf16>, vector<2x1x128xbf16> -> vector<2x10x128xbf16>
    %32 = vector.extract_strided_slice %31 {offsets = [0, 0, 0], sizes = [2, 8, 128], strides = [1, 1, 1]} : vector<2x10x128xbf16> to vector<2x8x128xbf16>
    %33 = vector.extract_strided_slice %31 {offsets = [0, 1, 0], sizes = [2, 8, 128], strides = [1, 1, 1]} : vector<2x10x128xbf16> to vector<2x8x128xbf16>
    %34 = vector.extract_strided_slice %31 {offsets = [0, 2, 0], sizes = [2, 8, 128], strides = [1, 1, 1]} : vector<2x10x128xbf16> to vector<2x8x128xbf16>
    %35 = tpu.concatenate %32, %33, %34 in 2 : vector<2x8x128xbf16>, vector<2x8x128xbf16>, vector<2x8x128xbf16> -> vector<2x8x384xbf16>
    %36 = vector.shape_cast %35 : vector<2x8x384xbf16> to vector<16x384xbf16>
    %cst_14 = arith.constant dense<0.000000e+00> : vector<16x128xf32>
    %37 = tpu.matmul %36, %27, %cst_14 {dimension_numbers = #tpu.dot_dimension_numbers<[1], [0], [0], [1], [0, 0, 1, 1], [], []>} : vector<16x384xbf16>, vector<384x128xbf16>, vector<16x128xf32> -> vector<16x128xf32>
    %38 = vector.broadcast %28 : vector<1x128xf32> to vector<16x128xf32>
    %39 = arith.addf %37, %38 : vector<16x128xf32>
    %cst_15 = arith.constant 0.000000e+00 : f32
    %40 = vector.broadcast %cst_15 : f32 to vector<16x128xf32>
    %41 = arith.maximumf %39, %40 : vector<16x128xf32>
    %42 = vector.shape_cast %41 : vector<16x128xf32> to vector<8x2x128xf32>
    %43 = vector.extract_strided_slice %42 {offsets = [0, 0, 0], sizes = [8, 1, 128], strides = [1, 1, 1]} : vector<8x2x128xf32> to vector<8x1x128xf32>
    %44 = vector.shape_cast %43 : vector<8x1x128xf32> to vector<8x128xf32>
    %45 = vector.extract_strided_slice %42 {offsets = [0, 1, 0], sizes = [8, 1, 128], strides = [1, 1, 1]} : vector<8x2x128xf32> to vector<8x1x128xf32>
    %46 = vector.shape_cast %45 : vector<8x1x128xf32> to vector<8x128xf32>
    %47 = arith.maximumf %44, %46 : vector<8x128xf32>
    %48 = vector.extract_strided_slice %47 {offsets = [0, 16], sizes = [8, 112], strides = [1, 1]} : vector<8x128xf32> to vector<8x112xf32>
    %cst_16 = arith.constant 0.000000e+00 : f32
    %49 = vector.broadcast %cst_16 : f32 to vector<8x16xf32>
    %50 = tpu.concatenate %48, %49 in 1 : vector<8x112xf32>, vector<8x16xf32> -> vector<8x128xf32>
    %51 = arith.maximumf %47, %50 : vector<8x128xf32>
    %52 = vector.shape_cast %51 : vector<8x128xf32> to vector<2x4x128xf32>
    %c0_17 = arith.constant 0 : index
    %c0_18 = arith.constant 0 : index
    %53 = vector.load %arg6[%c0_17, %c0_18] : memref<512x128xbf16, #tpu.memory_space<vmem>>, vector<512x128xbf16>
    %54 = vector.extract_strided_slice %52 {offsets = [0, 0, 0], sizes = [2, 1, 128], strides = [1, 1, 1]} : vector<2x4x128xf32> to vector<2x1x128xf32>
    %55 = vector.shape_cast %54 : vector<2x1x128xf32> to vector<2x128xf32>
    %56 = arith.truncf %55 : vector<2x128xf32> to vector<2x128xbf16>
    %57 = vector.extract_strided_slice %53 {offsets = [0, 0], sizes = [128, 128], strides = [1, 1]} : vector<512x128xbf16> to vector<128x128xbf16>
    %cst_19 = arith.constant dense<0.000000e+00> : vector<2x128xf32>
    %58 = tpu.matmul %56, %57, %cst_19 {dimension_numbers = #tpu.dot_dimension_numbers<[1], [0], [0], [1], [0, 0, 1, 1], [], []>} : vector<2x128xbf16>, vector<128x128xbf16>, vector<2x128xf32> -> vector<2x128xf32>
    %59 = vector.extract_strided_slice %52 {offsets = [0, 1, 0], sizes = [2, 1, 128], strides = [1, 1, 1]} : vector<2x4x128xf32> to vector<2x1x128xf32>
    %60 = vector.shape_cast %59 : vector<2x1x128xf32> to vector<2x128xf32>
    %61 = arith.truncf %60 : vector<2x128xf32> to vector<2x128xbf16>
    %62 = vector.extract_strided_slice %53 {offsets = [128, 0], sizes = [128, 128], strides = [1, 1]} : vector<512x128xbf16> to vector<128x128xbf16>
    %cst_20 = arith.constant dense<0.000000e+00> : vector<2x128xf32>
    %63 = tpu.matmul %61, %62, %cst_20 {dimension_numbers = #tpu.dot_dimension_numbers<[1], [0], [0], [1], [0, 0, 1, 1], [], []>} : vector<2x128xbf16>, vector<128x128xbf16>, vector<2x128xf32> -> vector<2x128xf32>
    %64 = arith.addf %58, %63 : vector<2x128xf32>
    %65 = vector.extract_strided_slice %52 {offsets = [0, 2, 0], sizes = [2, 1, 128], strides = [1, 1, 1]} : vector<2x4x128xf32> to vector<2x1x128xf32>
    %66 = vector.shape_cast %65 : vector<2x1x128xf32> to vector<2x128xf32>
    %67 = arith.truncf %66 : vector<2x128xf32> to vector<2x128xbf16>
    %68 = vector.extract_strided_slice %53 {offsets = [256, 0], sizes = [128, 128], strides = [1, 1]} : vector<512x128xbf16> to vector<128x128xbf16>
    %cst_21 = arith.constant dense<0.000000e+00> : vector<2x128xf32>
    %69 = tpu.matmul %67, %68, %cst_21 {dimension_numbers = #tpu.dot_dimension_numbers<[1], [0], [0], [1], [0, 0, 1, 1], [], []>} : vector<2x128xbf16>, vector<128x128xbf16>, vector<2x128xf32> -> vector<2x128xf32>
    %70 = arith.addf %64, %69 : vector<2x128xf32>
    %71 = vector.extract_strided_slice %52 {offsets = [0, 3, 0], sizes = [2, 1, 128], strides = [1, 1, 1]} : vector<2x4x128xf32> to vector<2x1x128xf32>
    %72 = vector.shape_cast %71 : vector<2x1x128xf32> to vector<2x128xf32>
    %73 = arith.truncf %72 : vector<2x128xf32> to vector<2x128xbf16>
    %74 = vector.extract_strided_slice %53 {offsets = [384, 0], sizes = [128, 128], strides = [1, 1]} : vector<512x128xbf16> to vector<128x128xbf16>
    %cst_22 = arith.constant dense<0.000000e+00> : vector<2x128xf32>
    %75 = tpu.matmul %73, %74, %cst_22 {dimension_numbers = #tpu.dot_dimension_numbers<[1], [0], [0], [1], [0, 0, 1, 1], [], []>} : vector<2x128xbf16>, vector<128x128xbf16>, vector<2x128xf32> -> vector<2x128xf32>
    %76 = arith.addf %70, %75 : vector<2x128xf32>
    %c0_23 = arith.constant 0 : index
    %c0_24 = arith.constant 0 : index
    %77 = vector.load %arg7[%c0_23, %c0_24] : memref<1x128xf32, #tpu.memory_space<vmem>>, vector<1x128xf32>
    %78 = vector.broadcast %77 : vector<1x128xf32> to vector<2x128xf32>
    %79 = arith.addf %76, %78 : vector<2x128xf32>
    %c0_25 = arith.constant 0 : index
    %c0_26 = arith.constant 0 : index
    %80 = vector.load %arg8[%c0_25, %c0_26] : memref<2x128xf32, #tpu.memory_space<vmem>>, vector<2x128xf32>
    tpu.vector_store %arg8[%c0_25, %c0_26], %79 {strides = array<i32>} : memref<2x128xf32, #tpu.memory_space<vmem>>, vector<2x128xf32>,
    return
  }
  func.func @transform_0(%arg0: i32) -> (i32, i32, i32) {
    %c0_i32 = arith.constant 0 : i32
    %c0_i32_0 = arith.constant 0 : i32
    %c0_i32_1 = arith.constant 0 : i32
    return %arg0, %c0_i32, %c0_i32_0 : i32, i32, i32
  }
  func.func @transform_1(%arg0: i32) -> (i32, i32) {
    %c0_i32 = arith.constant 0 : i32
    %c0_i32_0 = arith.constant 0 : i32
    %c0_i32_1 = arith.constant 0 : i32
    return %c0_i32, %c0_i32_0 : i32, i32
  }
  func.func @transform_2(%arg0: i32) -> (i32, i32) {
    %c0_i32 = arith.constant 0 : i32
    %c0_i32_0 = arith.constant 0 : i32
    %c0_i32_1 = arith.constant 0 : i32
    return %c0_i32, %c0_i32_0 : i32, i32
  }
  func.func @transform_3(%arg0: i32) -> (i32, i32) {
    %c0_i32 = arith.constant 0 : i32
    %c0_i32_0 = arith.constant 0 : i32
    %c0_i32_1 = arith.constant 0 : i32
    return %c0_i32, %c0_i32_0 : i32, i32
  }
  func.func @transform_4(%arg0: i32) -> (i32, i32) {
    %c0_i32 = arith.constant 0 : i32
    %c0_i32_0 = arith.constant 0 : i32
    %c0_i32_1 = arith.constant 0 : i32
    return %c0_i32, %c0_i32_0 : i32, i32
  }
  func.func @transform_5(%arg0: i32) -> (i32, i32) {
    %c0_i32 = arith.constant 0 : i32
    %c0_i32_0 = arith.constant 0 : i32
    %c0_i32_1 = arith.constant 0 : i32
    return %c0_i32, %c0_i32_0 : i32, i32
  }
  func.func @transform_6(%arg0: i32) -> (i32, i32) {
    %c0_i32 = arith.constant 0 : i32
    %c0_i32_0 = arith.constant 0 : i32
    %c0_i32_1 = arith.constant 0 : i32
    return %c0_i32, %c0_i32_0 : i32, i32
  }
  func.func @transform_7(%arg0: i32) -> (i32, i32) {
    %c0_i32 = arith.constant 0 : i32
    %c0_i32_0 = arith.constant 0 : i32
    return %arg0, %c0_i32 : i32, i32
  }
}

</mosaic_0001>

<llo_original>
// kernel: fwd.1
$region0: #{fwd.1}
  #allocation0 [shape = 'u32[]', space=smem, size = 0x4, offset = 0x4, fixed_abs, tag = 'smem constant byte address 0x4 - core index']
  #allocation1 [shape = 'u32[72,128]{1,0:T(1,128)}', space=vmem, size = 0x9000, scoped, tag = 'internal scratch']
  %s0 = inlined_call_operand.vmem [shape: f32[2,16,64], index: 0, kind: input, shape index: {}]
  %s1 = inlined_call_operand.vmem [shape: bf16[192,128], index: 1, kind: input, shape index: {}]
  %s2 = inlined_call_operand.vmem [shape: f32[1,128], index: 2, kind: input, shape index: {}]
  %s3 = inlined_call_operand.hbm [shape: bf16[384,128], index: 3, kind: input, shape index: {}]
  %s4 = inlined_call_operand.vmem [shape: f32[1,128], index: 4, kind: input, shape index: {}]
  %s5 = inlined_call_operand.vmem [shape: bf16[512,128], index: 5, kind: input, shape index: {}]
  %s6 = inlined_call_operand.vmem [shape: f32[1,128], index: 6, kind: input, shape index: {}]
  %s7 = inlined_call_operand.hbm [shape: f32[2,128], index: 7, kind: output, shape index: {}]
  %s8 = sld [smem:[#allocation0]]
  $region42: #{fwd.1} parent=0
    _
  %s10 = ssub.s32 1, %s8
  %s11 = scalar_select 0, %s10, %s8
  $region1: #{fwd.1} parent=0
    #allocation2 [shape = 'u8[98304]{0}', space=vmem, size = 0x18000, scoped, tag = 'input window, operand 3, single buffered']
    #allocation3 [shape = 's32[1]{0}', space=sflag, size = 0x4, scoped, tag = 'scoped memory for fwd.1']
    #allocation4 [shape = 's32[1]{0}', space=sflag, size = 0x4, scoped, tag = 'scoped memory for fwd.1']
    #allocation5 [shape = 'u8[1024]{0}', space=vmem, size = 0x400, scoped, tag = 'output window, operand 0, single buffered']
    %12 = vsyncpa [#allocation3], 0
    %13 = vsyncpa [#allocation4], 0
    // Predicated region
    $region2: #{fwd.1} parent=1 // pred_check
      _
    $region3: #{fwd.1} parent=1 // pred_check_branch
      %15 = sbr.rel (0) target = $region5
    $region4: #{fwd.1} parent=1 // pred_region
      _
    $region5: #{fwd.1} parent=1 // pred_fallthru
      _
    // Predicated region
    $region6: #{fwd.1} parent=1 // pred_check
      _
    $region7: #{fwd.1} parent=1 // pred_check_branch
      %17 = sbr.rel (0) target = $region9
    $region8: #{fwd.1} parent=1 // pred_region
      _
    $region9: #{fwd.1} parent=1 // pred_fallthru
      _
    // Predicated region
    $region10: #{fwd.1} parent=1 // pred_check
      _
    $region11: #{fwd.1} parent=1 // pred_check_branch
      %19 = sbr.rel (0) target = $region13
    $region12: #{fwd.1} parent=1 // pred_region
      _
    $region13: #{fwd.1} parent=1 // pred_fallthru
      _
    // Predicated region
    $region14: #{fwd.1} parent=1 // pred_check
      _
    $region15: #{fwd.1} parent=1 // pred_check_branch
      %21 = sbr.rel (0) target = $region17
    $region16: #{fwd.1} parent=1 // pred_region
      %23 = vsyncadd [#allocation3], 0
      %s24 = sshll.u32 %s3, 4
      %s25 = int_to_ptr.hbm [resolvable:$true] %s24
      %s26 = sshll.u32 [#allocation2], 4
      %s27 = int_to_ptr.vmem [resolvable:$true] %s26
      %32 = dma.hbm_to_vmem [thread:$0]  %s25, 3072, %s27, [#allocation3], 64, 64, 4
    $region17: #{fwd.1} parent=1 // pred_fallthru
      _
    // Predicated region
    $region18: #{fwd.1} parent=1 // pred_check
      _
    $region19: #{fwd.1} parent=1 // pred_check_branch
      %34 = sbr.rel (0) target = $region21
    $region20: #{fwd.1} parent=1 // pred_region
      _
    $region21: #{fwd.1} parent=1 // pred_fallthru
      _
    // Predicated region
    $region22: #{fwd.1} parent=1 // pred_check
      _
    $region23: #{fwd.1} parent=1 // pred_check_branch
      %36 = sbr.rel (0) target = $region25
    $region24: #{fwd.1} parent=1 // pred_region
      _
    $region25: #{fwd.1} parent=1 // pred_fallthru
      _
    // Predicated region
    $region26: #{fwd.1} parent=1 // pred_check
      _
    $region27: #{fwd.1} parent=1 // pred_check_branch
      %38 = sbr.rel (0) target = $region29
    $region28: #{fwd.1} parent=1 // pred_region
      _
    $region29: #{fwd.1} parent=1 // pred_fallthru
      _
    // Predicated region
    $region30: #{fwd.1} parent=1 // pred_check
      _
    $region31: #{fwd.1} parent=1 // pred_check_branch
      %40 = sbr.rel (0) target = $region33
    $region32: #{fwd.1} parent=1 // pred_region
      %42 = dma.done [#allocation3], 3072
    $region33: #{fwd.1} parent=1 // pred_fallthru
      _
    %v44 = vld [vmem:[%s0] sm:$0xff]
    %v45 = vld [vmem:[%s0 + $0x8] sm:$0xff]
    %v46 = vld [vmem:[%s0 + $0x10] sm:$0xff]
    %v47 = vld [vmem:[%s0 + $0x18] sm:$0xff]
    %v48 = vld [vmem:[%s1] sm:$0xf]
    %v49 = vld [vmem:[%s1 + $0x4] sm:$0xf]
    %v50 = vld [vmem:[%s1 + $0x8] sm:$0xf]
    %v51 = vld [vmem:[%s1 + $0xc] sm:$0xf]
    %v52 = vld [vmem:[%s1 + $0x10] sm:$0xf]
    %v53 = vld [vmem:[%s1 + $0x14] sm:$0xf]
    %v54 = vld [vmem:[%s1 + $0x18] sm:$0xf]
    %v55 = vld [vmem:[%s1 + $0x1c] sm:$0xf]
    %v56 = vld [vmem:[%s1 + $0x20] sm:$0xf]
    %v57 = vld [vmem:[%s1 + $0x24] sm:$0xf]
    %v58 = vld [vmem:[%s1 + $0x28] sm:$0xf]
    %v59 = vld [vmem:[%s1 + $0x2c] sm:$0xf]
    %v60 = vld [vmem:[%s1 + $0x30] sm:$0xf]
    %v61 = vld [vmem:[%s1 + $0x34] sm:$0xf]
    %v62 = vld [vmem:[%s1 + $0x38] sm:$0xf]
    %v63 = vld [vmem:[%s1 + $0x3c] sm:$0xf]
    %v64 = vld [vmem:[%s1 + $0x40] sm:$0xf]
    %v65 = vld [vmem:[%s1 + $0x44] sm:$0xf]
    %v66 = vld [vmem:[%s1 + $0x48] sm:$0xf]
    %v67 = vld [vmem:[%s1 + $0x4c] sm:$0xf]
    %v68 = vld [vmem:[%s1 + $0x50] sm:$0xf]
    %v69 = vld [vmem:[%s1 + $0x54] sm:$0xf]
    %v70 = vld [vmem:[%s1 + $0x58] sm:$0xf]
    %v71 = vld [vmem:[%s1 + $0x5c] sm:$0xf]
    %v72 = vld [vmem:[%s2] sm:$0x1]
    %v73 = vpack.c.bf16 %v44, %v44
    %v74 = vpack.c.bf16 %v45, %v45
    %v75 = vpack.c.bf16 %v46, %v46
    %v76 = vpack.c.bf16 %v47, %v47
    %v81 = vunpack.c.l.b16 %v73
    %v82 = vunpack.c.l.b16 %v74
    %v83 = vunpack.c.l.b16 %v75
    %v84 = vunpack.c.l.b16 %v76
    %v85 = vpack.c.b16 %v82, %v81
    %v86 = vpack.c.b16 %v84, %v83
    %v88 = vshrl.u32 %v85, 16
    %v90 = vrot.slane %v88, 7
    %v91 = vshll.u32 %v85, 16
    %v93 = vor.u32 %v90, %v91
    %v95 = vshrl.u32 %v86, 16
    %v97 = vrot.slane %v95, 7
    %v98 = vshll.u32 %v86, 16
    %v100 = vor.u32 %v97, %v98
    %vm105 = vcmask 1040384
    %vm106 = vsmask.f32 256
    %vm107 = vmand %vm105, %vm106
    %v108 = vsel %vm107, 0, %v93
    %v109 = vsel %vm107, 0, %v100
    %v110 = vsel %vm107, %v90, 0
    %v111 = vsel %vm107, %v97, 0
    %vm112 = vsmask.f32 7424
    %v114 = vshrl.u32 %v108, 16
    %v116 = vshll.u32 %v108, 16
    %v118 = vrot.slane %v116, 1
    %v119 = vor.u32 %v114, %v118
    %v121 = vshll.u32 %v110, 16
    %v123 = vrot.slane %v121, 1
    %v124 = vsel %vm112, %v119, %v123
    %v126 = vshrl.u32 %v109, 16
    %v128 = vshll.u32 %v109, 16
    %v130 = vrot.slane %v128, 1
    %v131 = vor.u32 %v126, %v130
    %v133 = vshll.u32 %v111, 16
    %v135 = vrot.slane %v133, 1
    %v136 = vsel %vm112, %v131, %v135
    %137 = vrot.lane.b32.xlu0 %v124, 64
    %v138 = vpop.permute.xlu0 %137
    %139 = vrot.lane.b32.xlu0 %v136, 64
    %v140 = vpop.permute.xlu0 %139
    %vm145 = vcmask 1046528
    %v146 = vrot.slane %v108, 1
    %v147 = vrot.slane %v110, 1
    %v148 = vsel %vm145, %v146, %v147
    %v149 = vrot.slane %v109, 1
    %v150 = vrot.slane %v111, 1
    %v151 = vsel %vm145, %v149, %v150
    %vm152 = vcmask 523264
    %v154 = vsel %vm152, %v108, %v138
    %v157 = vsel %vm152, %v109, %v140
    %v160 = vperm.slane %v72, 0
    %v186 = vunpack.c.l.b16 %v48
    %v187 = vunpack.c.l.b16 %v49
    %v188 = vunpack.c.l.b16 %v50
    %v189 = vunpack.c.l.b16 %v51
    %v190 = vunpack.c.l.b16 %v52
    %v191 = vunpack.c.l.b16 %v53
    %v192 = vunpack.c.l.b16 %v54
    %v193 = vunpack.c.l.b16 %v55
    %v194 = vunpack.c.l.b16 %v56
    %v195 = vunpack.c.l.b16 %v57
    %v196 = vunpack.c.l.b16 %v58
    %v197 = vunpack.c.l.b16 %v59
    %v198 = vunpack.c.l.b16 %v60
    %v199 = vunpack.c.l.b16 %v61
    %v200 = vunpack.c.l.b16 %v62
    %v201 = vunpack.c.l.b16 %v63
    %v202 = vunpack.c.l.b16 %v64
    %v203 = vunpack.c.l.b16 %v65
    %v204 = vunpack.c.l.b16 %v66
    %v205 = vunpack.c.l.b16 %v67
    %v206 = vunpack.c.l.b16 %v68
    %v207 = vunpack.c.l.b16 %v69
    %v208 = vunpack.c.l.b16 %v70
    %v209 = vunpack.c.l.b16 %v71
    %v210 = vpack.c.b16 %v187, %v186
    %v211 = vpack.c.b16 %v189, %v188
    %v212 = vpack.c.b16 %v191, %v190
    %v213 = vpack.c.b16 %v193, %v192
    %v214 = vpack.c.b16 %v195, %v194
    %v215 = vpack.c.b16 %v197, %v196
    %v216 = vpack.c.b16 %v199, %v198
    %v217 = vpack.c.b16 %v201, %v200
    %v218 = vpack.c.b16 %v203, %v202
    %v219 = vpack.c.b16 %v205, %v204
    %v220 = vpack.c.b16 %v207, %v206
    %v221 = vpack.c.b16 %v209, %v208
    %v235 = vsel %vm152, %v148, 0
    %v238 = vsel %vm152, %v151, 0
    %240 = vmatpush.bf16.msra.mxu0 %v217
    %241 = vmatpush.bf16.msra.mxu0 %v216
    %242 = vmatpush.bf16.msra.mxu0 %v215
    %243 = vmatpush.bf16.msra.mxu0 %v214
    %244 = vmatpush.bf16.msra.mxu0 %v213
    %245 = vmatpush.bf16.msra.mxu0 %v212
    %246 = vmatpush.bf16.msra.mxu0 %v211
    %247 = vmatpush.bf16.msra.mxu0 %v210
    %248 = vmatmul.bf16.gmra.mxu0 %v154
    %v249 = vpop.f32.mrf.mxu0
    %v250 = vadd.f32 %v160, %v249
    %v251 = vpop.f32.mrf.mxu0
    %v252 = vadd.f32 %v160, %v251
    %253 = vmatmul.bf16.gmra.mxu0 %v157
    %v254 = vpop.f32.mrf.mxu0
    %v255 = vadd.f32 %v160, %v254
    %v256 = vpop.f32.mrf.mxu0
    %v257 = vadd.f32 %v160, %v256
    %258 = vdwg.mxu0
    %259 = vmatpush.bf16.msra.mxu0 0
    %260 = vmatpush.bf16.msra.mxu0 0
    %261 = vmatpush.bf16.msra.mxu0 0
    %262 = vmatpush.bf16.msra.mxu0 0
    %263 = vmatpush.bf16.msra.mxu0 %v221
    %264 = vmatpush.bf16.msra.mxu0 %v220
    %265 = vmatpush.bf16.msra.mxu0 %v219
    %266 = vmatpush.bf16.msra.mxu0 %v218
    %267 = vmatmul.bf16.gmra.mxu0 %v235
    %v268 = vpop.f32.mrf.mxu0
    %v269 = vadd.f32 %v250, %v268
    %v270 = vpop.f32.mrf.mxu0
    %v271 = vadd.f32 %v252, %v270
    %272 = vmatmul.bf16.gmra.mxu0 %v238
    %v273 = vpop.f32.mrf.mxu0
    %v274 = vadd.f32 %v255, %v273
    %v275 = vpop.f32.mrf.mxu0
    %v276 = vadd.f32 %v257, %v275
    %277 = vdwg.mxu0
    %v278 = vmax.f32 %v269, 0.0
    %v279 = vmax.f32 %v271, 0.0
    %v280 = vmax.f32 %v274, 0.0
    %v281 = vmax.f32 %v276, 0.0
    %v286 = vrot.slane %v278, 2
    %v287 = vrot.slane %v278, 4
    %v288 = vrot.slane %v278, 6
    %v289 = vrot.slane %v279, 2
    %v290 = vrot.slane %v279, 4
    %v291 = vrot.slane %v279, 6
    %v292 = vrot.slane %v280, 2
    %v293 = vrot.slane %v280, 4
    %v294 = vrot.slane %v280, 6
    %v295 = vrot.slane %v281, 2
    %v296 = vrot.slane %v281, 4
    %v297 = vrot.slane %v281, 6
    %v310 = vrot.slane %v278, 7
    %v311 = vrot.slane %v310, 2
    %v312 = vrot.slane %v286, 7
    %v313 = vrot.slane %v312, 2
    %v314 = vrot.slane %v287, 7
    %v315 = vrot.slane %v314, 2
    %v316 = vrot.slane %v288, 7
    %v317 = vrot.slane %v316, 2
    %v318 = vrot.slane %v279, 7
    %v319 = vrot.slane %v318, 2
    %v320 = vrot.slane %v289, 7
    %v321 = vrot.slane %v320, 2
    %v322 = vrot.slane %v290, 7
    %v323 = vrot.slane %v322, 2
    %v324 = vrot.slane %v291, 7
    %v325 = vrot.slane %v324, 2
    %v326 = vrot.slane %v280, 7
    %v327 = vrot.slane %v326, 2
    %v328 = vrot.slane %v292, 7
    %v329 = vrot.slane %v328, 2
    %v330 = vrot.slane %v293, 7
    %v331 = vrot.slane %v330, 2
    %v332 = vrot.slane %v294, 7
    %v333 = vrot.slane %v332, 2
    %v334 = vrot.slane %v281, 7
    %v335 = vrot.slane %v334, 2
    %v336 = vrot.slane %v295, 7
    %v337 = vrot.slane %v336, 2
    %v338 = vrot.slane %v296, 7
    %v339 = vrot.slane %v338, 2
    %v340 = vrot.slane %v297, 7
    %v341 = vrot.slane %v340, 2
    %v358 = vmax.f32 %v278, %v311
    %v359 = vmax.f32 %v286, %v313
    %v360 = vmax.f32 %v287, %v315
    %v361 = vmax.f32 %v288, %v317
    %v362 = vmax.f32 %v279, %v319
    %v363 = vmax.f32 %v289, %v321
    %v364 = vmax.f32 %v290, %v323
    %v365 = vmax.f32 %v291, %v325
    %v366 = vmax.f32 %v280, %v327
    %v367 = vmax.f32 %v292, %v329
    %v368 = vmax.f32 %v293, %v331
    %v369 = vmax.f32 %v294, %v333
    %v370 = vmax.f32 %v281, %v335
    %v371 = vmax.f32 %v295, %v337
    %v372 = vmax.f32 %v296, %v339
    %v373 = vmax.f32 %v297, %v341
    %v390 = vperm.slane %v358, 0
    %v391 = vperm.slane %v359, 0
    %v392 = vperm.slane %v360, 0
    %v393 = vperm.slane %v361, 0
    %v394 = vperm.slane %v362, 0
    %v395 = vperm.slane %v363, 0
    %v396 = vperm.slane %v364, 0
    %v397 = vperm.slane %v365, 0
    %v398 = vperm.slane %v366, 0
    %v399 = vperm.slane %v367, 0
    %v400 = vperm.slane %v368, 0
    %v401 = vperm.slane %v369, 0
    %v402 = vperm.slane %v370, 0
    %v403 = vperm.slane %v371, 0
    %v404 = vperm.slane %v372, 0
    %v405 = vperm.slane %v373, 0
    %vm406 = vcmask 1041409
    %v407 = vsel %vm406, %v391, %v390
    %vm408 = vcmask 1042434
    %v409 = vsel %vm408, %v392, %v407
    %vm410 = vcmask 1043459
    %v411 = vsel %vm410, %v393, %v409
    %vm412 = vcmask 1044484
    %v413 = vsel %vm412, %v394, %v411
    %vm414 = vcmask 1045509
    %v415 = vsel %vm414, %v395, %v413
    %vm416 = vcmask 1046534
    %v417 = vsel %vm416, %v396, %v415
    %vm418 = vcmask 1047559
    %v419 = vsel %vm418, %v397, %v417
    %v420 = vsel %vm406, %v399, %v398
    %v421 = vsel %vm408, %v400, %v420
    %v422 = vsel %vm410, %v401, %v421
    %v423 = vsel %vm412, %v402, %v422
    %v424 = vsel %vm414, %v403, %v423
    %v425 = vsel %vm416, %v404, %v424
    %v426 = vsel %vm418, %v405, %v425
    %427 = vrot.lane.b32.xlu0 %v419, 120
    %v428 = vpop.permute.xlu0 %427
    %429 = vrot.lane.b32.xlu0 %v426, 120
    %v430 = vpop.permute.xlu0 %429
    %vm433 = vcmask 982016
    %v434 = vsel %vm433, %v428, 0.0
    %v435 = vsel %vm433, %v430, 0.0
    %v438 = vrot.slane %v434, 2
    %v439 = vrot.slane %v434, 4
    %v440 = vrot.slane %v434, 6
    %v441 = vrot.slane %v435, 2
    %v442 = vrot.slane %v435, 4
    %v443 = vrot.slane %v435, 6
    %v444 = vrot.slane %v434, 1
    %v445 = vrot.slane %v438, 1
    %v446 = vrot.slane %v439, 1
    %v447 = vrot.slane %v440, 1
    %v448 = vrot.slane %v435, 1
    %v449 = vrot.slane %v441, 1
    %v450 = vrot.slane %v442, 1
    %v451 = vrot.slane %v443, 1
    %v468 = vmax.f32 %v358, %v434
    %v469 = vmax.f32 %v359, %v444
    %v470 = vmax.f32 %v360, %v438
    %v471 = vmax.f32 %v361, %v445
    %v472 = vmax.f32 %v362, %v439
    %v473 = vmax.f32 %v363, %v446
    %v474 = vmax.f32 %v364, %v440
    %v475 = vmax.f32 %v365, %v447
    %v476 = vmax.f32 %v366, %v435
    %v477 = vmax.f32 %v367, %v448
    %v478 = vmax.f32 %v368, %v441
    %v479 = vmax.f32 %v369, %v449
    %v480 = vmax.f32 %v370, %v442
    %v481 = vmax.f32 %v371, %v450
    %v482 = vmax.f32 %v372, %v443
    %v483 = vmax.f32 %v373, %v451
    %v484 = vld [vmem:[#allocation2] sm:$0xf]
    %v485 = vld [vmem:[#allocation2 + $0x4] sm:$0xf]
    %v486 = vld [vmem:[#allocation2 + $0x8] sm:$0xf]
    %v487 = vld [vmem:[#allocation2 + $0xc] sm:$0xf]
    %v488 = vld [vmem:[#allocation2 + $0x10] sm:$0xf]
    %v489 = vld [vmem:[#allocation2 + $0x14] sm:$0xf]
    %v490 = vld [vmem:[#allocation2 + $0x18] sm:$0xf]
    %v491 = vld [vmem:[#allocation2 + $0x1c] sm:$0xf]
    %v492 = vld [vmem:[#allocation2 + $0x20] sm:$0xf]
    %v493 = vld [vmem:[#allocation2 + $0x24] sm:$0xf]
    %v494 = vld [vmem:[#allocation2 + $0x28] sm:$0xf]
    %v495 = vld [vmem:[#allocation2 + $0x2c] sm:$0xf]
    %v496 = vld [vmem:[#allocation2 + $0x30] sm:$0xf]
    %v497 = vld [vmem:[#allocation2 + $0x34] sm:$0xf]
    %v498 = vld [vmem:[#allocation2 + $0x38] sm:$0xf]
    %v499 = vld [vmem:[#allocation2 + $0x3c] sm:$0xf]
    %v500 = vld [vmem:[#allocation2 + $0x40] sm:$0xf]
    %v501 = vld [vmem:[#allocation2 + $0x44] sm:$0xf]
    %v502 = vld [vmem:[#allocation2 + $0x48] sm:$0xf]
    %v503 = vld [vmem:[#allocation2 + $0x4c] sm:$0xf]
    %v504 = vld [vmem:[#allocation2 + $0x50] sm:$0xf]
    %v505 = vld [vmem:[#allocation2 + $0x54] sm:$0xf]
    %v506 = vld [vmem:[#allocation2 + $0x58] sm:$0xf]
    %v507 = vld [vmem:[#allocation2 + $0x5c] sm:$0xf]
    %v508 = vld [vmem:[#allocation2 + $0x60] sm:$0xf]
    %v509 = vld [vmem:[#allocation2 + $0x64] sm:$0xf]
    %v510 = vld [vmem:[#allocation2 + $0x68] sm:$0xf]
    %v511 = vld [vmem:[#allocation2 + $0x6c] sm:$0xf]
    %v512 = vld [vmem:[#allocation2 + $0x70] sm:$0xf]
    %v513 = vld [vmem:[#allocation2 + $0x74] sm:$0xf]
    %v514 = vld [vmem:[#allocation2 + $0x78] sm:$0xf]
    %v515 = vld [vmem:[#allocation2 + $0x7c] sm:$0xf]
    %v516 = vld [vmem:[#allocation2 + $0x80] sm:$0xf]
    %v517 = vld [vmem:[#allocation2 + $0x84] sm:$0xf]
    %v518 = vld [vmem:[#allocation2 + $0x88] sm:$0xf]
    %v519 = vld [vmem:[#allocation2 + $0x8c] sm:$0xf]
    %v520 = vld [vmem:[#allocation2 + $0x90] sm:$0xf]
    %v521 = vld [vmem:[#allocation2 + $0x94] sm:$0xf]
    %v522 = vld [vmem:[#allocation2 + $0x98] sm:$0xf]
    %v523 = vld [vmem:[#allocation2 + $0x9c] sm:$0xf]
    %v524 = vld [vmem:[#allocation2 + $0xa0] sm:$0xf]
    %v525 = vld [vmem:[#allocation2 + $0xa4] sm:$0xf]
    %v526 = vld [vmem:[#allocation2 + $0xa8] sm:$0xf]
    %v527 = vld [vmem:[#allocation2 + $0xac] sm:$0xf]
    %v528 = vld [vmem:[#allocation2 + $0xb0] sm:$0xf]
    %v529 = vld [vmem:[#allocation2 + $0xb4] sm:$0xf]
    %v530 = vld [vmem:[#allocation2 + $0xb8] sm:$0xf]
    %v531 = vld [vmem:[#allocation2 + $0xbc] sm:$0xf]
    %v532 = vld [vmem:[%s4] sm:$0x1]
    %v533 = vpack.c.bf16 %v468, %v468
    %v534 = vpack.c.bf16 %v469, %v469
    %v535 = vpack.c.bf16 %v470, %v470
    %v536 = vpack.c.bf16 %v471, %v471
    %v537 = vpack.c.bf16 %v472, %v472
    %v538 = vpack.c.bf16 %v473, %v473
    %v539 = vpack.c.bf16 %v474, %v474
    %v540 = vpack.c.bf16 %v475, %v475
    %v541 = vpack.c.bf16 %v476, %v476
    %v542 = vpack.c.bf16 %v477, %v477
    %v543 = vpack.c.bf16 %v478, %v478
    %v544 = vpack.c.bf16 %v479, %v479
    %v545 = vpack.c.bf16 %v480, %v480
    %v546 = vpack.c.bf16 %v481, %v481
    %v547 = vpack.c.bf16 %v482, %v482
    %v548 = vpack.c.bf16 %v483, %v483
    %v565 = vunpack.c.l.b16 %v533
    %v566 = vunpack.c.l.b16 %v534
    %v567 = vunpack.c.l.b16 %v535
    %v568 = vunpack.c.l.b16 %v536
    %v569 = vunpack.c.l.b16 %v537
    %v570 = vunpack.c.l.b16 %v538
    %v571 = vunpack.c.l.b16 %v539
    %v572 = vunpack.c.l.b16 %v540
    %v573 = vunpack.c.l.b16 %v541
    %v574 = vunpack.c.l.b16 %v542
    %v575 = vunpack.c.l.b16 %v543
    %v576 = vunpack.c.l.b16 %v544
    %v577 = vunpack.c.l.b16 %v545
    %v578 = vunpack.c.l.b16 %v546
    %v579 = vunpack.c.l.b16 %v547
    %v580 = vunpack.c.l.b16 %v548
    %v581 = vpack.c.b16 %v565, %v565
    %v582 = vpack.c.b16 %v566, %v566
    %v583 = vpack.c.b16 %v567, %v567
    %v584 = vpack.c.b16 %v568, %v568
    %v585 = vpack.c.b16 %v569, %v569
    %v586 = vpack.c.b16 %v570, %v570
    %v587 = vpack.c.b16 %v571, %v571
    %v588 = vpack.c.b16 %v572, %v572
    %v589 = vpack.c.b16 %v573, %v573
    %v590 = vpack.c.b16 %v574, %v574
    %v591 = vpack.c.b16 %v575, %v575
    %v592 = vpack.c.b16 %v576, %v576
    %v593 = vpack.c.b16 %v577, %v577
    %v594 = vpack.c.b16 %v578, %v578
    %v595 = vpack.c.b16 %v579, %v579
    %v596 = vpack.c.b16 %v580, %v580
    %v597 = vunpack.c.l.b16 %v581
    %v598 = vunpack.c.l.b16 %v582
    %v599 = vunpack.c.l.b16 %v583
    %v600 = vunpack.c.l.b16 %v584
    %v601 = vunpack.c.l.b16 %v585
    %v602 = vunpack.c.l.b16 %v586
    %v603 = vunpack.c.l.b16 %v587
    %v604 = vunpack.c.l.b16 %v588
    %v605 = vunpack.c.l.b16 %v589
    %v606 = vunpack.c.l.b16 %v590
    %v607 = vunpack.c.l.b16 %v591
    %v608 = vunpack.c.l.b16 %v592
    %v609 = vunpack.c.l.b16 %v593
    %v610 = vunpack.c.l.b16 %v594
    %v611 = vunpack.c.l.b16 %v595
    %v612 = vunpack.c.l.b16 %v596
    %v613 = vrot.slane %v597, 7
    %v614 = vrot.slane %v598, 6
    %v615 = vsel %vm408, %v614, %v613
    %v616 = vrot.slane %v599, 5
    %v617 = vsel %vm410, %v616, %v615
    %v618 = vrot.slane %v600, 4
    %v619 = vsel %vm412, %v618, %v617
    %v620 = vrot.slane %v601, 3
    %v621 = vsel %vm414, %v620, %v619
    %v622 = vrot.slane %v602, 2
    %v623 = vsel %vm416, %v622, %v621
    %v624 = vrot.slane %v603, 1
    %v625 = vsel %vm418, %v624, %v623
    %v626 = vrot.slane %v605, 7
    %v627 = vrot.slane %v606, 6
    %v628 = vsel %vm408, %v627, %v626
    %v629 = vrot.slane %v607, 5
    %v630 = vsel %vm410, %v629, %v628
    %v631 = vrot.slane %v608, 4
    %v632 = vsel %vm412, %v631, %v630
    %v633 = vrot.slane %v609, 3
    %v634 = vsel %vm414, %v633, %v632
    %v635 = vrot.slane %v610, 2
    %v636 = vsel %vm416, %v635, %v634
    %v637 = vrot.slane %v611, 1
    %v638 = vsel %vm418, %v637, %v636
    %v639 = vpack.c.b16 %v604, %v625
    %v640 = vpack.c.b16 %v612, %v638
    %v643 = vsel %vm107, 0, %v639
    %v644 = vsel %vm107, 0, %v640
    %vm645 = vcmask 1044480
    %vm646 = vsmask.f32 4352
    %vm647 = vmand %vm645, %vm646
    %v648 = vsel %vm647, %v643, 0
    %v649 = vsel %vm647, %v644, 0
    %v651 = vshrl.u32 %v648, 16
    %v653 = vshll.u32 %v648, 16
    %v655 = vrot.slane %v653, 1
    %v656 = vor.u32 %v651, %v655
    %v658 = vshrl.u32 %v649, 16
    %v660 = vshll.u32 %v649, 16
    %v662 = vrot.slane %v660, 1
    %v663 = vor.u32 %v658, %v662
    %v666 = vrot.slane %v648, 1
    %v667 = vrot.slane %v649, 1
    %v668 = vunpack.c.l.b16 %v648
    %v669 = vunpack.c.l.b16 %v656
    %v670 = vunpack.c.l.b16 %v666
    %v671 = vunpack.c.l.b16 %v649
    %v672 = vunpack.c.l.b16 %v663
    %v673 = vunpack.c.l.b16 %v667
    %v675 = vperm.slane %v532, 0
    %v677 = vpack.c.b16 %v671, %v668
    %v678 = vpack.c.b16 %v672, %v669
    %v679 = vpack.c.b16 %v673, %v670
    %v731 = vunpack.c.l.b16 %v484
    %v732 = vunpack.c.l.b16 %v485
    %v733 = vunpack.c.l.b16 %v486
    %v734 = vunpack.c.l.b16 %v487
    %v735 = vunpack.c.l.b16 %v488
    %v736 = vunpack.c.l.b16 %v489
    %v737 = vunpack.c.l.b16 %v490
    %v738 = vunpack.c.l.b16 %v491
    %v739 = vunpack.c.l.b16 %v492
    %v740 = vunpack.c.l.b16 %v493
    %v741 = vunpack.c.l.b16 %v494
    %v742 = vunpack.c.l.b16 %v495
    %v743 = vunpack.c.l.b16 %v496
    %v744 = vunpack.c.l.b16 %v497
    %v745 = vunpack.c.l.b16 %v498
    %v746 = vunpack.c.l.b16 %v499
    %v747 = vunpack.c.l.b16 %v500
    %v748 = vunpack.c.l.b16 %v501
    %v749 = vunpack.c.l.b16 %v502
    %v750 = vunpack.c.l.b16 %v503
    %v751 = vunpack.c.l.b16 %v504
    %v752 = vunpack.c.l.b16 %v505
    %v753 = vunpack.c.l.b16 %v506
    %v754 = vunpack.c.l.b16 %v507
    %v755 = vunpack.c.l.b16 %v508
    %v756 = vunpack.c.l.b16 %v509
    %v757 = vunpack.c.l.b16 %v510
    %v758 = vunpack.c.l.b16 %v511
    %v759 = vunpack.c.l.b16 %v512
    %v760 = vunpack.c.l.b16 %v513
    %v761 = vunpack.c.l.b16 %v514
    %v762 = vunpack.c.l.b16 %v515
    %v763 = vunpack.c.l.b16 %v516
    %v764 = vunpack.c.l.b16 %v517
    %v765 = vunpack.c.l.b16 %v518
    %v766 = vunpack.c.l.b16 %v519
    %v767 = vunpack.c.l.b16 %v520
    %v768 = vunpack.c.l.b16 %v521
    %v769 = vunpack.c.l.b16 %v522
    %v770 = vunpack.c.l.b16 %v523
    %v771 = vunpack.c.l.b16 %v524
    %v772 = vunpack.c.l.b16 %v525
    %v773 = vunpack.c.l.b16 %v526
    %v774 = vunpack.c.l.b16 %v527
    %v775 = vunpack.c.l.b16 %v528
    %v776 = vunpack.c.l.b16 %v529
    %v777 = vunpack.c.l.b16 %v530
    %v778 = vunpack.c.l.b16 %v531
    %v779 = vpack.c.b16 %v732, %v731
    %v780 = vpack.c.b16 %v734, %v733
    %v781 = vpack.c.b16 %v736, %v735
    %v782 = vpack.c.b16 %v738, %v737
    %v783 = vpack.c.b16 %v740, %v739
    %v784 = vpack.c.b16 %v742, %v741
    %v785 = vpack.c.b16 %v744, %v743
    %v786 = vpack.c.b16 %v746, %v745
    %v787 = vpack.c.b16 %v748, %v747
    %v788 = vpack.c.b16 %v750, %v749
    %v789 = vpack.c.b16 %v752, %v751
    %v790 = vpack.c.b16 %v754, %v753
    %v791 = vpack.c.b16 %v756, %v755
    %v792 = vpack.c.b16 %v758, %v757
    %v793 = vpack.c.b16 %v760, %v759
    %v794 = vpack.c.b16 %v762, %v761
    %v795 = vpack.c.b16 %v764, %v763
    %v796 = vpack.c.b16 %v766, %v765
    %v797 = vpack.c.b16 %v768, %v767
    %v798 = vpack.c.b16 %v770, %v769
    %v799 = vpack.c.b16 %v772, %v771
    %v800 = vpack.c.b16 %v774, %v773
    %v801 = vpack.c.b16 %v776, %v775
    %v802 = vpack.c.b16 %v778, %v777
    %827 = vmatpush.bf16.msra.mxu0 %v786
    %828 = vmatpush.bf16.msra.mxu0 %v785
    %829 = vmatpush.bf16.msra.mxu0 %v784
    %830 = vmatpush.bf16.msra.mxu0 %v783
    %831 = vmatpush.bf16.msra.mxu0 %v782
    %832 = vmatpush.bf16.msra.mxu0 %v781
    %833 = vmatpush.bf16.msra.mxu0 %v780
    %834 = vmatpush.bf16.msra.mxu0 %v779
    %835 = vmatmul.bf16.gmra.mxu0 %v677
    %v836 = vpop.f32.mrf.mxu0
    %v837 = vadd.f32 %v675, %v836
    %v838 = vpop.f32.mrf.mxu0
    %v839 = vadd.f32 %v675, %v838
    %840 = vdwg.mxu0
    %841 = vmatpush.bf16.msra.mxu0 %v794
    %842 = vmatpush.bf16.msra.mxu0 %v793
    %843 = vmatpush.bf16.msra.mxu0 %v792
    %844 = vmatpush.bf16.msra.mxu0 %v791
    %845 = vmatpush.bf16.msra.mxu0 %v790
    %846 = vmatpush.bf16.msra.mxu0 %v789
    %847 = vmatpush.bf16.msra.mxu0 %v788
    %848 = vmatpush.bf16.msra.mxu0 %v787
    %849 = vmatmul.bf16.gmra.mxu0 %v678
    %v850 = vpop.f32.mrf.mxu0
    %v851 = vadd.f32 %v837, %v850
    %v852 = vpop.f32.mrf.mxu0
    %v853 = vadd.f32 %v839, %v852
    %854 = vdwg.mxu0
    %855 = vmatpush.bf16.msra.mxu0 %v802
    %856 = vmatpush.bf16.msra.mxu0 %v801
    %857 = vmatpush.bf16.msra.mxu0 %v800
    %858 = vmatpush.bf16.msra.mxu0 %v799
    %859 = vmatpush.bf16.msra.mxu0 %v798
    %860 = vmatpush.bf16.msra.mxu0 %v797
    %861 = vmatpush.bf16.msra.mxu0 %v796
    %862 = vmatpush.bf16.msra.mxu0 %v795
    %863 = vmatmul.bf16.gmra.mxu0 %v679
    %v864 = vpop.f32.mrf.mxu0
    %v865 = vadd.f32 %v851, %v864
    %v866 = vpop.f32.mrf.mxu0
    %v867 = vadd.f32 %v853, %v866
    %868 = vdwg.mxu0
    %v869 = vmax.f32 %v865, 0.0
    %v870 = vmax.f32 %v867, 0.0
    %v873 = vrot.slane %v869, 2
    %v874 = vrot.slane %v869, 4
    %v875 = vrot.slane %v869, 6
    %v876 = vrot.slane %v870, 2
    %v877 = vrot.slane %v870, 4
    %v878 = vrot.slane %v870, 6
    %v885 = vrot.slane %v869, 7
    %v886 = vrot.slane %v885, 2
    %v887 = vrot.slane %v873, 7
    %v888 = vrot.slane %v887, 2
    %v889 = vrot.slane %v874, 7
    %v890 = vrot.slane %v889, 2
    %v891 = vrot.slane %v875, 7
    %v892 = vrot.slane %v891, 2
    %v893 = vrot.slane %v870, 7
    %v894 = vrot.slane %v893, 2
    %v895 = vrot.slane %v876, 7
    %v896 = vrot.slane %v895, 2
    %v897 = vrot.slane %v877, 7
    %v898 = vrot.slane %v897, 2
    %v899 = vrot.slane %v878, 7
    %v900 = vrot.slane %v899, 2
    %v909 = vmax.f32 %v869, %v886
    %v910 = vmax.f32 %v873, %v888
    %v911 = vmax.f32 %v874, %v890
    %v912 = vmax.f32 %v875, %v892
    %v913 = vmax.f32 %v870, %v894
    %v914 = vmax.f32 %v876, %v896
    %v915 = vmax.f32 %v877, %v898
    %v916 = vmax.f32 %v878, %v900
    %v925 = vperm.slane %v909, 0
    %v926 = vperm.slane %v910, 0
    %v927 = vperm.slane %v911, 0
    %v928 = vperm.slane %v912, 0
    %v929 = vperm.slane %v913, 0
    %v930 = vperm.slane %v914, 0
    %v931 = vperm.slane %v915, 0
    %v932 = vperm.slane %v916, 0
    %v933 = vsel %vm406, %v926, %v925
    %v934 = vsel %vm408, %v927, %v933
    %v935 = vsel %vm410, %v928, %v934
    %v936 = vsel %vm412, %v929, %v935
    %v937 = vsel %vm414, %v930, %v936
    %v938 = vsel %vm416, %v931, %v937
    %v939 = vsel %vm418, %v932, %v938
    %940 = vrot.lane.b32.xlu0 %v939, 112
    %v941 = vpop.permute.xlu0 %940
    %vm943 = vcmask 916480
    %v944 = vsel %vm943, %v941, 0.0
    %v946 = vrot.slane %v944, 2
    %v947 = vrot.slane %v944, 4
    %v948 = vrot.slane %v944, 6
    %v949 = vrot.slane %v944, 1
    %v950 = vrot.slane %v946, 1
    %v951 = vrot.slane %v947, 1
    %v952 = vrot.slane %v948, 1
    %v961 = vmax.f32 %v909, %v944
    %v962 = vmax.f32 %v910, %v949
    %v963 = vmax.f32 %v911, %v946
    %v964 = vmax.f32 %v912, %v950
    %v965 = vmax.f32 %v913, %v947
    %v966 = vmax.f32 %v914, %v951
    %v967 = vmax.f32 %v915, %v948
    %v968 = vmax.f32 %v916, %v952
    %v969 = vld [vmem:[%s5] sm:$0xf]
    %v970 = vld [vmem:[%s5 + $0x4] sm:$0xf]
    %v971 = vld [vmem:[%s5 + $0x8] sm:$0xf]
    %v972 = vld [vmem:[%s5 + $0xc] sm:$0xf]
    %v973 = vld [vmem:[%s5 + $0x10] sm:$0xf]
    %v974 = vld [vmem:[%s5 + $0x14] sm:$0xf]
    %v975 = vld [vmem:[%s5 + $0x18] sm:$0xf]
    %v976 = vld [vmem:[%s5 + $0x1c] sm:$0xf]
    %v977 = vld [vmem:[%s5 + $0x20] sm:$0xf]
    %v978 = vld [vmem:[%s5 + $0x24] sm:$0xf]
    %v979 = vld [vmem:[%s5 + $0x28] sm:$0xf]
    %v980 = vld [vmem:[%s5 + $0x2c] sm:$0xf]
    %v981 = vld [vmem:[%s5 + $0x30] sm:$0xf]
    %v982 = vld [vmem:[%s5 + $0x34] sm:$0xf]
    %v983 = vld [vmem:[%s5 + $0x38] sm:$0xf]
    %v984 = vld [vmem:[%s5 + $0x3c] sm:$0xf]
    %v985 = vld [vmem:[%s5 + $0x40] sm:$0xf]
    %v986 = vld [vmem:[%s5 + $0x44] sm:$0xf]
    %v987 = vld [vmem:[%s5 + $0x48] sm:$0xf]
    %v988 = vld [vmem:[%s5 + $0x4c] sm:$0xf]
    %v989 = vld [vmem:[%s5 + $0x50] sm:$0xf]
    %v990 = vld [vmem:[%s5 + $0x54] sm:$0xf]
    %v991 = vld [vmem:[%s5 + $0x58] sm:$0xf]
    %v992 = vld [vmem:[%s5 + $0x5c] sm:$0xf]
    %v993 = vld [vmem:[%s5 + $0x60] sm:$0xf]
    %v994 = vld [vmem:[%s5 + $0x64] sm:$0xf]
    %v995 = vld [vmem:[%s5 + $0x68] sm:$0xf]
    %v996 = vld [vmem:[%s5 + $0x6c] sm:$0xf]
    %v997 = vld [vmem:[%s5 + $0x70] sm:$0xf]
    %v998 = vld [vmem:[%s5 + $0x74] sm:$0xf]
    %v999 = vld [vmem:[%s5 + $0x78] sm:$0xf]
    %v1000 = vld [vmem:[%s5 + $0x7c] sm:$0xf]
    %v1001 = vld [vmem:[%s5 + $0x80] sm:$0xf]
    %v1002 = vld [vmem:[%s5 + $0x84] sm:$0xf]
    %v1003 = vld [vmem:[%s5 + $0x88] sm:$0xf]
    %v1004 = vld [vmem:[%s5 + $0x8c] sm:$0xf]
    %v1005 = vld [vmem:[%s5 + $0x90] sm:$0xf]
    %v1006 = vld [vmem:[%s5 + $0x94] sm:$0xf]
    %v1007 = vld [vmem:[%s5 + $0x98] sm:$0xf]
    %v1008 = vld [vmem:[%s5 + $0x9c] sm:$0xf]
    %v1009 = vld [vmem:[%s5 + $0xa0] sm:$0xf]
    %v1010 = vld [vmem:[%s5 + $0xa4] sm:$0xf]
    %v1011 = vld [vmem:[%s5 + $0xa8] sm:$0xf]
    %v1012 = vld [vmem:[%s5 + $0xac] sm:$0xf]
    %v1013 = vld [vmem:[%s5 + $0xb0] sm:$0xf]
    %v1014 = vld [vmem:[%s5 + $0xb4] sm:$0xf]
    %v1015 = vld [vmem:[%s5 + $0xb8] sm:$0xf]
    %v1016 = vld [vmem:[%s5 + $0xbc] sm:$0xf]
    %v1017 = vld [vmem:[%s5 + $0xc0] sm:$0xf]
    %v1018 = vld [vmem:[%s5 + $0xc4] sm:$0xf]
    %v1019 = vld [vmem:[%s5 + $0xc8] sm:$0xf]
    %v1020 = vld [vmem:[%s5 + $0xcc] sm:$0xf]
    %v1021 = vld [vmem:[%s5 + $0xd0] sm:$0xf]
    %v1022 = vld [vmem:[%s5 + $0xd4] sm:$0xf]
    %v1023 = vld [vmem:[%s5 + $0xd8] sm:$0xf]
    %v1024 = vld [vmem:[%s5 + $0xdc] sm:$0xf]
    %v1025 = vld [vmem:[%s5 + $0xe0] sm:$0xf]
    %v1026 = vld [vmem:[%s5 + $0xe4] sm:$0xf]
    %v1027 = vld [vmem:[%s5 + $0xe8] sm:$0xf]
    %v1028 = vld [vmem:[%s5 + $0xec] sm:$0xf]
    %v1029 = vld [vmem:[%s5 + $0xf0] sm:$0xf]
    %v1030 = vld [vmem:[%s5 + $0xf4] sm:$0xf]
    %v1031 = vld [vmem:[%s5 + $0xf8] sm:$0xf]
    %v1032 = vld [vmem:[%s5 + $0xfc] sm:$0xf]
    %v1033 = vpack.c.bf16 %v961, %v961
    %v1034 = vpack.c.bf16 %v965, %v965
    %v1035 = vpack.c.bf16 %v962, %v962
    %v1036 = vpack.c.bf16 %v966, %v966
    %v1039 = vunpack.c.l.b16 %v1035
    %v1040 = vunpack.c.l.b16 %v1036
    %v1041 = vrot.slane %v1040, 7
    %v1042 = vsel %vm406, %v1041, %v1039
    %v1043 = vpack.c.b16 %v1042, %v1042
    %v1061 = vunpack.c.l.b16 %v985
    %v1062 = vunpack.c.l.b16 %v986
    %v1063 = vunpack.c.l.b16 %v987
    %v1064 = vunpack.c.l.b16 %v988
    %v1065 = vunpack.c.l.b16 %v989
    %v1066 = vunpack.c.l.b16 %v990
    %v1067 = vunpack.c.l.b16 %v991
    %v1068 = vunpack.c.l.b16 %v992
    %v1069 = vunpack.c.l.b16 %v993
    %v1070 = vunpack.c.l.b16 %v994
    %v1071 = vunpack.c.l.b16 %v995
    %v1072 = vunpack.c.l.b16 %v996
    %v1073 = vunpack.c.l.b16 %v997
    %v1074 = vunpack.c.l.b16 %v998
    %v1075 = vunpack.c.l.b16 %v999
    %v1076 = vunpack.c.l.b16 %v1000
    %v1077 = vpack.c.b16 %v1062, %v1061
    %v1078 = vpack.c.b16 %v1064, %v1063
    %v1079 = vpack.c.b16 %v1066, %v1065
    %v1080 = vpack.c.b16 %v1068, %v1067
    %v1081 = vpack.c.b16 %v1070, %v1069
    %v1082 = vpack.c.b16 %v1072, %v1071
    %v1083 = vpack.c.b16 %v1074, %v1073
    %v1084 = vpack.c.b16 %v1076, %v1075
    %1093 = vmatpush.bf16.msra.mxu0 %v1084
    %1094 = vmatpush.bf16.msra.mxu0 %v1083
    %1095 = vmatpush.bf16.msra.mxu0 %v1082
    %1096 = vmatpush.bf16.msra.mxu0 %v1081
    %1097 = vmatpush.bf16.msra.mxu0 %v1080
    %1098 = vmatpush.bf16.msra.mxu0 %v1079
    %1099 = vmatpush.bf16.msra.mxu0 %v1078
    %1100 = vmatpush.bf16.msra.mxu0 %v1077
    %1101 = vmatmul.bf16.gmra.mxu0 %v1043
    %v1102 = vpop.f32.mrf.mxu0
    %v1103 = vadd.f32 0.0, %v1102
    %v1104 = vpop.f32.mrf.mxu0
    %1105 = vdwg.mxu0
    %v1108 = vunpack.c.l.b16 %v1033
    %v1109 = vunpack.c.l.b16 %v1034
    %v1110 = vrot.slane %v1109, 7
    %v1111 = vsel %vm406, %v1110, %v1108
    %v1112 = vpack.c.b16 %v1111, %v1111
    %v1130 = vunpack.c.l.b16 %v969
    %v1131 = vunpack.c.l.b16 %v970
    %v1132 = vunpack.c.l.b16 %v971
    %v1133 = vunpack.c.l.b16 %v972
    %v1134 = vunpack.c.l.b16 %v973
    %v1135 = vunpack.c.l.b16 %v974
    %v1136 = vunpack.c.l.b16 %v975
    %v1137 = vunpack.c.l.b16 %v976
    %v1138 = vunpack.c.l.b16 %v977
    %v1139 = vunpack.c.l.b16 %v978
    %v1140 = vunpack.c.l.b16 %v979
    %v1141 = vunpack.c.l.b16 %v980
    %v1142 = vunpack.c.l.b16 %v981
    %v1143 = vunpack.c.l.b16 %v982
    %v1144 = vunpack.c.l.b16 %v983
    %v1145 = vunpack.c.l.b16 %v984
    %v1146 = vpack.c.b16 %v1131, %v1130
    %v1147 = vpack.c.b16 %v1133, %v1132
    %v1148 = vpack.c.b16 %v1135, %v1134
    %v1149 = vpack.c.b16 %v1137, %v1136
    %v1150 = vpack.c.b16 %v1139, %v1138
    %v1151 = vpack.c.b16 %v1141, %v1140
    %v1152 = vpack.c.b16 %v1143, %v1142
    %v1153 = vpack.c.b16 %v1145, %v1144
    %1162 = vmatpush.bf16.msra.mxu0 %v1153
    %1163 = vmatpush.bf16.msra.mxu0 %v1152
    %1164 = vmatpush.bf16.msra.mxu0 %v1151
    %1165 = vmatpush.bf16.msra.mxu0 %v1150
    %1166 = vmatpush.bf16.msra.mxu0 %v1149
    %1167 = vmatpush.bf16.msra.mxu0 %v1148
    %1168 = vmatpush.bf16.msra.mxu0 %v1147
    %1169 = vmatpush.bf16.msra.mxu0 %v1146
    %1170 = vmatmul.bf16.gmra.mxu0 %v1112
    %v1171 = vpop.f32.mrf.mxu0
    %v1172 = vadd.f32 %v1103, %v1171
    %v1173 = vpop.f32.mrf.mxu0
    %1174 = vdwg.mxu0
    %v1175 = vpack.c.bf16 %v963, %v963
    %v1176 = vpack.c.bf16 %v967, %v967
    %v1179 = vunpack.c.l.b16 %v1175
    %v1180 = vunpack.c.l.b16 %v1176
    %v1181 = vrot.slane %v1180, 7
    %v1182 = vsel %vm406, %v1181, %v1179
    %v1183 = vpack.c.b16 %v1182, %v1182
    %v1201 = vunpack.c.l.b16 %v1001
    %v1202 = vunpack.c.l.b16 %v1002
    %v1203 = vunpack.c.l.b16 %v1003
    %v1204 = vunpack.c.l.b16 %v1004
    %v1205 = vunpack.c.l.b16 %v1005
    %v1206 = vunpack.c.l.b16 %v1006
    %v1207 = vunpack.c.l.b16 %v1007
    %v1208 = vunpack.c.l.b16 %v1008
    %v1209 = vunpack.c.l.b16 %v1009
    %v1210 = vunpack.c.l.b16 %v1010
    %v1211 = vunpack.c.l.b16 %v1011
    %v1212 = vunpack.c.l.b16 %v1012
    %v1213 = vunpack.c.l.b16 %v1013
    %v1214 = vunpack.c.l.b16 %v1014
    %v1215 = vunpack.c.l.b16 %v1015
    %v1216 = vunpack.c.l.b16 %v1016
    %v1217 = vpack.c.b16 %v1202, %v1201
    %v1218 = vpack.c.b16 %v1204, %v1203
    %v1219 = vpack.c.b16 %v1206, %v1205
    %v1220 = vpack.c.b16 %v1208, %v1207
    %v1221 = vpack.c.b16 %v1210, %v1209
    %v1222 = vpack.c.b16 %v1212, %v1211
    %v1223 = vpack.c.b16 %v1214, %v1213
    %v1224 = vpack.c.b16 %v1216, %v1215
    %1233 = vmatpush.bf16.msra.mxu0 %v1224
    %1234 = vmatpush.bf16.msra.mxu0 %v1223
    %1235 = vmatpush.bf16.msra.mxu0 %v1222
    %1236 = vmatpush.bf16.msra.mxu0 %v1221
    %1237 = vmatpush.bf16.msra.mxu0 %v1220
    %1238 = vmatpush.bf16.msra.mxu0 %v1219
    %1239 = vmatpush.bf16.msra.mxu0 %v1218
    %1240 = vmatpush.bf16.msra.mxu0 %v1217
    %1241 = vmatmul.bf16.gmra.mxu0 %v1183
    %v1242 = vpop.f32.mrf.mxu0
    %v1243 = vadd.f32 0.0, %v1242
    %v1244 = vpop.f32.mrf.mxu0
    %1245 = vdwg.mxu0
    %v1246 = vadd.f32 %v1172, %v1243
    %v1247 = vpack.c.bf16 %v964, %v964
    %v1248 = vpack.c.bf16 %v968, %v968
    %v1251 = vunpack.c.l.b16 %v1247
    %v1252 = vunpack.c.l.b16 %v1248
    %v1253 = vrot.slane %v1252, 7
    %v1254 = vsel %vm406, %v1253, %v1251
    %v1255 = vpack.c.b16 %v1254, %v1254
    %v1273 = vunpack.c.l.b16 %v1017
    %v1274 = vunpack.c.l.b16 %v1018
    %v1275 = vunpack.c.l.b16 %v1019
    %v1276 = vunpack.c.l.b16 %v1020
    %v1277 = vunpack.c.l.b16 %v1021
    %v1278 = vunpack.c.l.b16 %v1022
    %v1279 = vunpack.c.l.b16 %v1023
    %v1280 = vunpack.c.l.b16 %v1024
    %v1281 = vunpack.c.l.b16 %v1025
    %v1282 = vunpack.c.l.b16 %v1026
    %v1283 = vunpack.c.l.b16 %v1027
    %v1284 = vunpack.c.l.b16 %v1028
    %v1285 = vunpack.c.l.b16 %v1029
    %v1286 = vunpack.c.l.b16 %v1030
    %v1287 = vunpack.c.l.b16 %v1031
    %v1288 = vunpack.c.l.b16 %v1032
    %v1289 = vpack.c.b16 %v1274, %v1273
    %v1290 = vpack.c.b16 %v1276, %v1275
    %v1291 = vpack.c.b16 %v1278, %v1277
    %v1292 = vpack.c.b16 %v1280, %v1279
    %v1293 = vpack.c.b16 %v1282, %v1281
    %v1294 = vpack.c.b16 %v1284, %v1283
    %v1295 = vpack.c.b16 %v1286, %v1285
    %v1296 = vpack.c.b16 %v1288, %v1287
    %1305 = vmatpush.bf16.msra.mxu0 %v1296
    %1306 = vmatpush.bf16.msra.mxu0 %v1295
    %1307 = vmatpush.bf16.msra.mxu0 %v1294
    %1308 = vmatpush.bf16.msra.mxu0 %v1293
    %1309 = vmatpush.bf16.msra.mxu0 %v1292
    %1310 = vmatpush.bf16.msra.mxu0 %v1291
    %1311 = vmatpush.bf16.msra.mxu0 %v1290
    %1312 = vmatpush.bf16.msra.mxu0 %v1289
    %1313 = vmatmul.bf16.gmra.mxu0 %v1255
    %v1314 = vpop.f32.mrf.mxu0
    %v1315 = vadd.f32 0.0, %v1314
    %v1316 = vpop.f32.mrf.mxu0
    %1317 = vdwg.mxu0
    %v1318 = vadd.f32 %v1246, %v1315
    %v1319 = vld [vmem:[%s6] sm:$0x1]
    %v1321 = vperm.slane %v1319, 0
    %v1323 = vadd.f32 %v1318, %v1321
    %1324 = vst [vmem:[#allocation5] sm:$0x3] %v1323
    // Predicated region
    $region34: #{fwd.1} parent=1 // pred_check
      _
    $region35: #{fwd.1} parent=1 // pred_check_branch
      %1326 = sbr.rel (0) target = $region37
    $region36: #{fwd.1} parent=1 // pred_region
      %1328 = vsyncadd [#allocation4], 0
      %s1330 = sshll.u32 [#allocation5], 4
      %s1331 = int_to_ptr.vmem [resolvable:$true] %s1330
      %s1332 = sshll.u32 %s7, 4
      %s1333 = int_to_ptr.hbm [resolvable:$true] %s1332
      %1335 = dma.vmem_to_hbm [thread:$0]  %s1331, 32, %s1333, [#allocation4]
    $region37: #{fwd.1} parent=1 // pred_fallthru
      _
    // Predicated region
    $region38: #{fwd.1} parent=1 // pred_check
      _
    $region39: #{fwd.1} parent=1 // pred_check_branch
      %1337 = sbr.rel (0) target = $region41
    $region40: #{fwd.1} parent=1 // pred_region
      %1339 = dma.done [#allocation4], 32
    $region41: #{fwd.1} parent=1 // pred_fallthru
      _
    %1340 = vsyncpa [#allocation3], 1
    %1341 = vsyncpa [#allocation4], 1

</llo_original>
